<compile_context>
chip_gen: v6e
topology: v6e:2x2x1
jax: 0.10.0
libtpu: 0.0.40
codegen_flags: <defaults>
</compile_context>

<pallas_src>
import functools

import jax
import jax.numpy as jnp
from jax import lax
from jax.experimental import pallas as pl
from jax.experimental.pallas import tpu as pltpu


def _round_up(x, m):
    return ((x + m - 1) // m) * m


def mlp_kernel(xt_ref, w0_ref, b0_ref, wm_ref, bm_ref, wl_ref, bl_ref, o_ref,
               *, num_mid, d_in, chunk, n_chunks, eup_bf16):
    """Fused MLP in (features, batch) layout, processed in lane sub-chunks.

    xt_ref: (d_in, TM)          input rows [x; t], batch on lanes
    w0_ref: (DH, d_in)          layer-0 weight (torch (out, in), rows padded)
    b0_ref: (DH, 1)             layer-0 bias
    wm_ref: (n_slab, DH, DH)    hidden->hidden weights (zero padded)
    bm_ref: (n_slab, DH, 1)     hidden->hidden biases
    wl_ref: (out_dim, DH)       last-layer weight (f32)
    bl_ref: (out_dim, 1)        last-layer bias
    o_ref : (out_dim, TM)       lane-dense output
    """

    def tanh(z):
        if eup_bf16:
            # v6e/v7x only (bf16 EUP): ~2x tanh throughput; keep f32 accumulation.
            return jnp.tanh(z.astype(jnp.bfloat16)).astype(jnp.float32)
        return jnp.tanh(z)

    # Weights are tiny (a handful of vregs); load once per invocation. Their
    # constant index maps also keep them VMEM-resident across grid steps.
    w0 = w0_ref[...]                                # (DH, d_in)
    b0 = b0_ref[...]                                # (DH, 1)
    wm = [wm_ref[l] for l in range(num_mid)]        # each (DH, DH)
    bm = [bm_ref[l] for l in range(num_mid)]        # each (DH, 1)
    wl = wl_ref[...]                                # (out_dim, DH)
    bl = bl_ref[...]                                # (out_dim, 1)

    def body(c, carry):
        c0 = pl.multiple_of(c * chunk, chunk)
        cols = pl.ds(c0, chunk)

        # Layer 0: in_dim is tiny (2) -> VPU broadcast FMAs, not a K=2 matmul.
        z = b0
        for j in range(d_in):
            z = z + w0[:, j:j + 1] * xt_ref[j:j + 1, cols]   # -> (DH, chunk)
        h = tanh(z)

        # Hidden layers on the MXU (f32 operands; huge MXU slack at DH=32).
        for l in range(num_mid):
            acc = jnp.dot(wm[l], h, preferred_element_type=jnp.float32)
            h = tanh(acc + bm[l])

        # Last layer in f32; lane-dense store over this batch sub-chunk.
        u = jnp.dot(wl, h, preferred_element_type=jnp.float32) + bl
        o_ref[:, cols] = u.astype(o_ref.dtype)
        return carry

    # Short fixed trip count: unroll for LLO scheduler visibility while the
    # per-chunk stores keep activation live ranges bounded.
    lax.fori_loop(0, n_chunks, body, None, unroll=True)


def pack_pinn_params(weights, biases):
    """Pad/pack PyTorch-layout (out, in) params ONCE, outside the step path."""
    num_layers = len(weights)
    assert num_layers >= 2, "PINN needs at least one hidden layer"
    d_in = int(weights[0].shape[1])
    out_dim = int(weights[-1].shape[0])
    hidden_dims = [int(w.shape[0]) for w in weights[:-1]]
    dh = _round_up(max(hidden_dims), 8)          # hidden dims live on sublanes

    w0 = jnp.zeros((dh, d_in), jnp.float32).at[:hidden_dims[0], :].set(
        jnp.asarray(weights[0], jnp.float32))
    b0 = jnp.zeros((dh, 1), jnp.float32).at[:hidden_dims[0], 0].set(
        jnp.asarray(biases[0], jnp.float32))

    num_mid = num_layers - 2
    n_slab = max(num_mid, 1)                     # keep shapes static if no mids
    wm = jnp.zeros((n_slab, dh, dh), jnp.float32)
    bm = jnp.zeros((n_slab, dh, 1), jnp.float32)
    for l in range(num_mid):
        w = jnp.asarray(weights[l + 1], jnp.float32)
        b = jnp.asarray(biases[l + 1], jnp.float32)
        wm = wm.at[l, : w.shape[0], : w.shape[1]].set(w)
        bm = bm.at[l, : b.shape[0], 0].set(b)

    wl = jnp.zeros((out_dim, dh), jnp.float32).at[:, : weights[-1].shape[1]].set(
        jnp.asarray(weights[-1], jnp.float32))
    bl = jnp.asarray(biases[-1], jnp.float32).reshape(out_dim, 1)

    arrays = (w0, b0, wm, bm, wl, bl)
    static = dict(
        d_in=d_in, out_dim=out_dim, dh=dh, num_mid=num_mid, n_slab=n_slab,
        flops_per_point=2 * sum(int(w.shape[0]) * int(w.shape[1]) for w in weights),
        trans_per_point=sum(hidden_dims),
    )
    return arrays, static


def pinn_forward_packed(x, t, packed, *, tile_m=4096, eup_bf16=False):
    """Forward pass using pre-packed params (hoisted out of the step path).

    x, t: (N, 1) float32; returns (N, out_dim) float32.
    """
    arrays, st = packed
    w0, b0, wm, bm, wl, bl = arrays
    d_in, out_dim, dh = st["d_in"], st["out_dim"], st["dh"]
    num_mid, n_slab = st["num_mid"], st["n_slab"]

    N = int(x.shape[0])
    # Build the (d_in, N) row stack directly; for (N,1) columns these
    # transposes are free reshapes (no HBM transpose pass).
    xt_rows = jnp.concatenate([x.T, t.T], axis=0).astype(jnp.float32)
    assert xt_rows.shape[0] == d_in, "x/t columns must match layer-0 fan-in"

    # Batch on lanes: pad to a multiple of the (128-aligned) batch tile, and
    # keep >= 2 grid tiles when possible so v7x's two TensorCores both get work.
    n_min = _round_up(N, 128)
    tm = min(_round_up(tile_m, 128), n_min)
    if n_min // tm < 2 and n_min >= 256:
        tm = _round_up((n_min + 1) // 2, 128)
    n_pad = _round_up(N, tm)

    xt_T = jnp.pad(xt_rows, ((0, 0), (0, n_pad - N)))      # (d_in, n_pad)

    # In-kernel sub-chunking keeps the live activation at ~(dh, chunk) vregs.
    chunk = 512 if tm % 512 == 0 else (256 if tm % 256 == 0 else 128)
    n_chunks = tm // chunk

    grid = (n_pad // tm,)

    flops = st["flops_per_point"] * n_pad
    transcendentals = st["trans_per_point"] * n_pad
    bytes_accessed = 4 * (d_in + out_dim) * n_pad + sum(
        int(a.size) * int(a.dtype.itemsize) for a in arrays)

    out = pl.pallas_call(
        functools.partial(mlp_kernel, num_mid=num_mid, d_in=d_in,
                          chunk=chunk, n_chunks=n_chunks, eup_bf16=eup_bf16),
        out_shape=jax.ShapeDtypeStruct((out_dim, n_pad), jnp.float32),
        grid_spec=pltpu.PrefetchScalarGridSpec(
            num_scalar_prefetch=0,
            grid=grid,
            in_specs=[
                pl.BlockSpec((d_in, tm), lambda i: (0, i)),           # activations
                pl.BlockSpec((dh, d_in), lambda i: (0, 0)),           # w0
                pl.BlockSpec((dh, 1), lambda i: (0, 0)),              # b0
                pl.BlockSpec((n_slab, dh, dh), lambda i: (0, 0, 0)),  # wm stack
                pl.BlockSpec((n_slab, dh, 1), lambda i: (0, 0, 0)),   # bm stack
                pl.BlockSpec((out_dim, dh), lambda i: (0, 0)),        # w_last
                pl.BlockSpec((out_dim, 1), lambda i: (0, 0)),         # b_last
            ],
            out_specs=pl.BlockSpec((out_dim, tm), lambda i: (0, i)),
        ),
        compiler_params=pltpu.CompilerParams(
            dimension_semantics=("parallel",),
        ),
        cost_estimate=pl.CostEstimate(
            flops=flops,
            transcendentals=transcendentals,
            bytes_accessed=bytes_accessed,
        ),
    )(xt_T, w0, b0, wm, bm, wl, bl)

    if out_dim == 1:
        # Free reshape of a single lane-dense row; no output transpose pass.
        return out[0, :N].reshape(N, 1)
    return out[:, :N].T


def pinn_forward(x, t, weights, biases, *, tile_m=4096, eup_bf16=False):
    """Convenience wrapper: packs params then runs the fused kernel.
    For training loops, call pack_pinn_params once and reuse the packed params."""
    packed = pack_pinn_params(weights, biases)
    return pinn_forward_packed(x, t, packed, tile_m=tile_m, eup_bf16=eup_bf16)


def init_pinn_params(layers, key):
    """Xavier-normal weights in PyTorch (out, in) layout, zero biases."""
    weights, biases = [], []
    for i in range(len(layers) - 1):
        key, sub = jax.random.split(key)
        fan_in, fan_out = layers[i], layers[i + 1]
        std = (2.0 / (fan_in + fan_out)) ** 0.5
        w = std * jax.random.normal(sub, (fan_out, fan_in), dtype=jnp.float32)
        b = jnp.zeros((fan_out,), jnp.float32)
        weights.append(w)
        biases.append(b)
    return weights, biases


def pinn_forward_ref(x, t, weights, biases):
    """Pure-JAX reference matching the PyTorch forward (torch weight layout)."""
    h = jnp.concatenate([x, t], axis=1)
    for w, b in zip(weights[:-1], biases[:-1]):
        h = jnp.tanh(h @ w.T + b)
    return h @ weights[-1].T + biases[-1]


if __name__ == "__main__":
    layers = [2, 32, 32, 32, 1]   # [x, t] -> hidden -> hidden -> hidden -> u
    N = 8

    key = jax.random.PRNGKey(0)
    kx, kt, kp = jax.random.split(key, 3)
    x = jax.random.normal(kx, (N, 1), dtype=jnp.float32)
    t = jax.random.normal(kt, (N, 1), dtype=jnp.float32)
    weights, biases = init_pinn_params(layers, kp)

    # Pack once (hoisted off the per-step critical path), then run the kernel.
    packed = pack_pinn_params(weights, biases)
    u = pinn_forward_packed(x, t, packed)
    u = jax.block_until_ready(u)

    u_ref = pinn_forward_ref(x, t, weights, biases)
    assert u.shape == (N, layers[-1])
    assert jnp.allclose(u, u_ref, atol=1e-5, rtol=1e-5), "mismatch vs JAX reference"

    print("KERNEL_OK")
</pallas_src>

<mosaic_0001>
module attributes {stable_mosaic.version = 11 : i64} {
  func.func @mlp_kernel(%arg0: i32, %arg1: memref<2x128xf32, #tpu.memory_space<vmem>>, %arg2: memref<32x2xf32, #tpu.memory_space<vmem>>, %arg3: memref<32x1xf32, #tpu.memory_space<vmem>>, %arg4: memref<2x32x32xf32, #tpu.memory_space<vmem>>, %arg5: memref<2x32x1xf32, #tpu.memory_space<vmem>>, %arg6: memref<1x32xf32, #tpu.memory_space<vmem>>, %arg7: memref<1x1xf32, #tpu.memory_space<vmem>>, %arg8: memref<1x128xf32, #tpu.memory_space<vmem>>) attributes {dimension_semantics = [#tpu.dimension_semantics<parallel>], iteration_bounds = array<i64: 1>, scalar_prefetch = 0 : i64, scratch_operands = 0 : i64, tpu.core_type = #tpu.core_type<tc>, window_params = [{transform_indices = @transform_0, window_bounds = array<i64: 2, 128>}, {pipeline_mode = #tpu.pipeline_mode<synchronous>, transform_indices = @transform_1, window_bounds = array<i64: 32, 2>}, {pipeline_mode = #tpu.pipeline_mode<synchronous>, transform_indices = @transform_2, window_bounds = array<i64: 32, 1>}, {pipeline_mode = #tpu.pipeline_mode<synchronous>, transform_indices = @transform_3, window_bounds = array<i64: 2, 32, 32>}, {pipeline_mode = #tpu.pipeline_mode<synchronous>, transform_indices = @transform_4, window_bounds = array<i64: 2, 32, 1>}, {pipeline_mode = #tpu.pipeline_mode<synchronous>, transform_indices = @transform_5, window_bounds = array<i64: 1, 32>}, {pipeline_mode = #tpu.pipeline_mode<synchronous>, transform_indices = @transform_6, window_bounds = array<i64: 1, 1>}, {transform_indices = @transform_7, window_bounds = array<i64: 1, 128>}]} {
    %c0 = arith.constant 0 : index
    %c0_0 = arith.constant 0 : index
    %0 = vector.load %arg2[%c0, %c0_0] : memref<32x2xf32, #tpu.memory_space<vmem>>, vector<32x2xf32>
    %c0_1 = arith.constant 0 : index
    %c0_2 = arith.constant 0 : index
    %1 = vector.load %arg3[%c0_1, %c0_2] : memref<32x1xf32, #tpu.memory_space<vmem>>, vector<32x1xf32>
    %c0_3 = arith.constant 0 : index
    %c0_4 = arith.constant 0 : index
    %c0_5 = arith.constant 0 : index
    %2 = vector.load %arg4[%c0_3, %c0_4, %c0_5] : memref<2x32x32xf32, #tpu.memory_space<vmem>>, vector<1x32x32xf32>
    %3 = vector.shape_cast %2 : vector<1x32x32xf32> to vector<32x32xf32>
    %c1 = arith.constant 1 : index
    %c0_6 = arith.constant 0 : index
    %c0_7 = arith.constant 0 : index
    %4 = vector.load %arg4[%c1, %c0_6, %c0_7] : memref<2x32x32xf32, #tpu.memory_space<vmem>>, vector<1x32x32xf32>
    %5 = vector.shape_cast %4 : vector<1x32x32xf32> to vector<32x32xf32>
    %c0_8 = arith.constant 0 : index
    %c0_9 = arith.constant 0 : index
    %c0_10 = arith.constant 0 : index
    %6 = vector.load %arg5[%c0_8, %c0_9, %c0_10] : memref<2x32x1xf32, #tpu.memory_space<vmem>>, vector<1x32x1xf32>
    %7 = vector.shape_cast %6 : vector<1x32x1xf32> to vector<32x1xf32>
    %c1_11 = arith.constant 1 : index
    %c0_12 = arith.constant 0 : index
    %c0_13 = arith.constant 0 : index
    %8 = vector.load %arg5[%c1_11, %c0_12, %c0_13] : memref<2x32x1xf32, #tpu.memory_space<vmem>>, vector<1x32x1xf32>
    %9 = vector.shape_cast %8 : vector<1x32x1xf32> to vector<32x1xf32>
    %c0_14 = arith.constant 0 : index
    %c0_15 = arith.constant 0 : index
    %10 = vector.load %arg6[%c0_14, %c0_15] : memref<1x32xf32, #tpu.memory_space<vmem>>, vector<1x32xf32>
    %c0_16 = arith.constant 0 : index
    %c0_17 = arith.constant 0 : index
    %11 = vector.load %arg7[%c0_16, %c0_17] : memref<1x1xf32, #tpu.memory_space<vmem>>, vector<1x1xf32>
    %c0_i32 = arith.constant 0 : i32
    %c128_i32 = arith.constant 128 : i32
    %12 = arith.muli %c0_i32, %c128_i32 : i32
    %13 = tpu.assume_multiple %12, 128 : i32
    %14 = vector.extract_strided_slice %0 {offsets = [0, 0], sizes = [32, 1], strides = [1, 1]} : vector<32x2xf32> to vector<32x1xf32>
    %c0_18 = arith.constant 0 : index
    %15 = arith.index_cast %13 : i32 to index
    %16 = vector.load %arg1[%c0_18, %15] : memref<2x128xf32, #tpu.memory_space<vmem>>, vector<1x128xf32>
    %17 = vector.broadcast %14 : vector<32x1xf32> to vector<32x128xf32>
    %18 = vector.broadcast %16 : vector<1x128xf32> to vector<32x128xf32>
    %19 = arith.mulf %17, %18 : vector<32x128xf32>
    %20 = vector.broadcast %1 : vector<32x1xf32> to vector<32x128xf32>
    %21 = arith.addf %20, %19 : vector<32x128xf32>
    %22 = vector.extract_strided_slice %0 {offsets = [0, 1], sizes = [32, 1], strides = [1, 1]} : vector<32x2xf32> to vector<32x1xf32>
    %c1_19 = arith.constant 1 : index
    %23 = arith.index_cast %13 : i32 to index
    %24 = vector.load %arg1[%c1_19, %23] : memref<2x128xf32, #tpu.memory_space<vmem>>, vector<1x128xf32>
    %25 = vector.broadcast %22 : vector<32x1xf32> to vector<32x128xf32>
    %26 = vector.broadcast %24 : vector<1x128xf32> to vector<32x128xf32>
    %27 = arith.mulf %25, %26 : vector<32x128xf32>
    %28 = arith.addf %21, %27 : vector<32x128xf32>
    %29 = math.tanh %28 : vector<32x128xf32>
    %cst = arith.constant dense<0.000000e+00> : vector<32x128xf32>
    %30 = tpu.matmul %3, %29, %cst {dimension_numbers = #tpu.dot_dimension_numbers<[1], [0], [0], [1], [0, 0, 1, 1], [], []>} : vector<32x32xf32>, vector<32x128xf32>, vector<32x128xf32> -> vector<32x128xf32>
    %31 = vector.broadcast %7 : vector<32x1xf32> to vector<32x128xf32>
    %32 = arith.addf %30, %31 : vector<32x128xf32>
    %33 = math.tanh %32 : vector<32x128xf32>
    %cst_20 = arith.constant dense<0.000000e+00> : vector<32x128xf32>
    %34 = tpu.matmul %5, %33, %cst_20 {dimension_numbers = #tpu.dot_dimension_numbers<[1], [0], [0], [1], [0, 0, 1, 1], [], []>} : vector<32x32xf32>, vector<32x128xf32>, vector<32x128xf32> -> vector<32x128xf32>
    %35 = vector.broadcast %9 : vector<32x1xf32> to vector<32x128xf32>
    %36 = arith.addf %34, %35 : vector<32x128xf32>
    %37 = math.tanh %36 : vector<32x128xf32>
    %cst_21 = arith.constant dense<0.000000e+00> : vector<1x128xf32>
    %38 = tpu.matmul %10, %37, %cst_21 {dimension_numbers = #tpu.dot_dimension_numbers<[1], [0], [0], [1], [0, 0, 1, 1], [], []>} : vector<1x32xf32>, vector<32x128xf32>, vector<1x128xf32> -> vector<1x128xf32>
    %39 = vector.broadcast %11 : vector<1x1xf32> to vector<1x128xf32>
    %40 = arith.addf %38, %39 : vector<1x128xf32>
    %c0_22 = arith.constant 0 : index
    %41 = arith.index_cast %13 : i32 to index
    %42 = vector.load %arg8[%c0_22, %41] : memref<1x128xf32, #tpu.memory_space<vmem>>, vector<1x128xf32>
    tpu.vector_store %arg8[%c0_22, %41], %40 {strides = array<i32>} : memref<1x128xf32, #tpu.memory_space<vmem>>, vector<1x128xf32>,
    %c1_i32 = arith.constant 1 : i32
    return
  }
  func.func @transform_0(%arg0: i32) -> (i32, i32) {
    %c0_i32 = arith.constant 0 : i32
    %c0_i32_0 = arith.constant 0 : i32
    return %c0_i32, %arg0 : i32, i32
  }
  func.func @transform_1(%arg0: i32) -> (i32, i32) {
    %c0_i32 = arith.constant 0 : i32
    %c0_i32_0 = arith.constant 0 : i32
    %c0_i32_1 = arith.constant 0 : i32
    return %c0_i32, %c0_i32_0 : i32, i32
  }
  func.func @transform_2(%arg0: i32) -> (i32, i32) {
    %c0_i32 = arith.constant 0 : i32
    %c0_i32_0 = arith.constant 0 : i32
    %c0_i32_1 = arith.constant 0 : i32
    return %c0_i32, %c0_i32_0 : i32, i32
  }
  func.func @transform_3(%arg0: i32) -> (i32, i32, i32) {
    %c0_i32 = arith.constant 0 : i32
    %c0_i32_0 = arith.constant 0 : i32
    %c0_i32_1 = arith.constant 0 : i32
    %c0_i32_2 = arith.constant 0 : i32
    return %c0_i32, %c0_i32_0, %c0_i32_1 : i32, i32, i32
  }
  func.func @transform_4(%arg0: i32) -> (i32, i32, i32) {
    %c0_i32 = arith.constant 0 : i32
    %c0_i32_0 = arith.constant 0 : i32
    %c0_i32_1 = arith.constant 0 : i32
    %c0_i32_2 = arith.constant 0 : i32
    return %c0_i32, %c0_i32_0, %c0_i32_1 : i32, i32, i32
  }
  func.func @transform_5(%arg0: i32) -> (i32, i32) {
    %c0_i32 = arith.constant 0 : i32
    %c0_i32_0 = arith.constant 0 : i32
    %c0_i32_1 = arith.constant 0 : i32
    return %c0_i32, %c0_i32_0 : i32, i32
  }
  func.func @transform_6(%arg0: i32) -> (i32, i32) {
    %c0_i32 = arith.constant 0 : i32
    %c0_i32_0 = arith.constant 0 : i32
    %c0_i32_1 = arith.constant 0 : i32
    return %c0_i32, %c0_i32_0 : i32, i32
  }
  func.func @transform_7(%arg0: i32) -> (i32, i32) {
    %c0_i32 = arith.constant 0 : i32
    %c0_i32_0 = arith.constant 0 : i32
    return %c0_i32, %arg0 : i32, i32
  }
}

</mosaic_0001>

<llo_original>
// kernel: tpu_custom_call.1
$region0: #{tpu_custom_call.1}
  #allocation0 [shape = 'u32[]', space=smem, size = 0x4, offset = 0x4, fixed_abs, tag = 'smem constant byte address 0x4 - core index']
  #allocation1 [shape = 'u32[144,128]{1,0:T(1,128)}', space=vmem, size = 0x12000, scoped, tag = 'internal scratch']
  #allocation2 [shape = 'f32[1,1]{1,0:T(1,128)S(1)}', space=vmem, size = 0x200, scoped, tag = 'scoped memory for tpu_custom_call.1']
  %s0 = inlined_call_operand.vmem [shape: f32[2,128], index: 0, kind: input, shape index: {}]
  %s1 = inlined_call_operand.vmem [shape: f32[32,2], index: 1, kind: input, shape index: {}]
  %s2 = inlined_call_operand.vmem [shape: f32[32,1], index: 2, kind: input, shape index: {}]
  %s3 = inlined_call_operand.vmem [shape: f32[2,32,32], index: 3, kind: input, shape index: {}]
  %s4 = inlined_call_operand.vmem [shape: f32[2,32,1], index: 4, kind: input, shape index: {}]
  %s5 = inlined_call_operand.vmem [shape: f32[1,32], index: 5, kind: input, shape index: {}]
  %s6 = inlined_call_operand.<no memory space> [shape: f32[1,1], index: 6, kind: input, shape index: {}]
  %s7 = inlined_call_operand.hbm [shape: f32[1,128], index: 7, kind: output, shape index: {}]
  %s8 = sld [smem:[#allocation0]]
  $region38: #{tpu_custom_call.1} parent=0
    _
  %s10 = ssub.s32 1, %s8
  %s11 = scalar_select 0, %s10, %s8
  %v12 = vstv %s6
  %13 = vst [vmem:[#allocation2] sm:$0x1] %v12
  $region1: #{tpu_custom_call.1} parent=0
    #allocation3 [shape = 'u8[512]{0}', space=vmem, size = 0x400, scoped, tag = 'output window, operand 0, single buffered']
    #allocation4 [shape = 's32[1]{0}', space=sflag, size = 0x4, scoped, tag = 'scoped memory for tpu_custom_call.1']
    %14 = vsyncpa [#allocation4], 0
    // Predicated region
    $region2: #{tpu_custom_call.1} parent=1 // pred_check
      _
    $region3: #{tpu_custom_call.1} parent=1 // pred_check_branch
      %16 = sbr.rel (0) target = $region5
    $region4: #{tpu_custom_call.1} parent=1 // pred_region
      _
    $region5: #{tpu_custom_call.1} parent=1 // pred_fallthru
      _
    // Predicated region
    $region6: #{tpu_custom_call.1} parent=1 // pred_check
      _
    $region7: #{tpu_custom_call.1} parent=1 // pred_check_branch
      %18 = sbr.rel (0) target = $region9
    $region8: #{tpu_custom_call.1} parent=1 // pred_region
      _
    $region9: #{tpu_custom_call.1} parent=1 // pred_fallthru
      _
    // Predicated region
    $region10: #{tpu_custom_call.1} parent=1 // pred_check
      _
    $region11: #{tpu_custom_call.1} parent=1 // pred_check_branch
      %20 = sbr.rel (0) target = $region13
    $region12: #{tpu_custom_call.1} parent=1 // pred_region
      _
    $region13: #{tpu_custom_call.1} parent=1 // pred_fallthru
      _
    // Predicated region
    $region14: #{tpu_custom_call.1} parent=1 // pred_check
      _
    $region15: #{tpu_custom_call.1} parent=1 // pred_check_branch
      %22 = sbr.rel (0) target = $region17
    $region16: #{tpu_custom_call.1} parent=1 // pred_region
      _
    $region17: #{tpu_custom_call.1} parent=1 // pred_fallthru
      _
    // Predicated region
    $region18: #{tpu_custom_call.1} parent=1 // pred_check
      _
    $region19: #{tpu_custom_call.1} parent=1 // pred_check_branch
      %24 = sbr.rel (0) target = $region21
    $region20: #{tpu_custom_call.1} parent=1 // pred_region
      _
    $region21: #{tpu_custom_call.1} parent=1 // pred_fallthru
      _
    // Predicated region
    $region22: #{tpu_custom_call.1} parent=1 // pred_check
      _
    $region23: #{tpu_custom_call.1} parent=1 // pred_check_branch
      %26 = sbr.rel (0) target = $region25
    $region24: #{tpu_custom_call.1} parent=1 // pred_region
      _
    $region25: #{tpu_custom_call.1} parent=1 // pred_fallthru
      _
    // Predicated region
    $region26: #{tpu_custom_call.1} parent=1 // pred_check
      _
    $region27: #{tpu_custom_call.1} parent=1 // pred_check_branch
      %28 = sbr.rel (0) target = $region29
    $region28: #{tpu_custom_call.1} parent=1 // pred_region
      _
    $region29: #{tpu_custom_call.1} parent=1 // pred_fallthru
      _
    %v29 = vld [vmem:[%s1] sm:$0xff]
    %v30 = vld [vmem:[%s1 + $0x8] sm:$0xff]
    %v31 = vld [vmem:[%s1 + $0x10] sm:$0xff]
    %v32 = vld [vmem:[%s1 + $0x18] sm:$0xff]
    %v33 = vld [vmem:[%s2] sm:$0xff]
    %v34 = vld [vmem:[%s2 + $0x8] sm:$0xff]
    %v35 = vld [vmem:[%s2 + $0x10] sm:$0xff]
    %v36 = vld [vmem:[%s2 + $0x18] sm:$0xff]
    %v37 = vld [vmem:[%s3] sm:$0xff]
    %v38 = vld [vmem:[%s3 + $0x8] sm:$0xff]
    %v39 = vld [vmem:[%s3 + $0x10] sm:$0xff]
    %v40 = vld [vmem:[%s3 + $0x18] sm:$0xff]
    %s41 = scalar_lea.vmem %s3, 32
    %v42 = vld [vmem:[%s41] sm:$0xff]
    %v43 = vld [vmem:[%s41 + $0x8] sm:$0xff]
    %v44 = vld [vmem:[%s41 + $0x10] sm:$0xff]
    %v45 = vld [vmem:[%s41 + $0x18] sm:$0xff]
    %v46 = vld [vmem:[%s4] sm:$0xff]
    %v47 = vld [vmem:[%s4 + $0x8] sm:$0xff]
    %v48 = vld [vmem:[%s4 + $0x10] sm:$0xff]
    %v49 = vld [vmem:[%s4 + $0x18] sm:$0xff]
    %s50 = scalar_lea.vmem %s4, 32
    %v51 = vld [vmem:[%s50] sm:$0xff]
    %v52 = vld [vmem:[%s50 + $0x8] sm:$0xff]
    %v53 = vld [vmem:[%s50 + $0x10] sm:$0xff]
    %v54 = vld [vmem:[%s50 + $0x18] sm:$0xff]
    %v55 = vld [vmem:[%s5] sm:$0x1]
    %v56 = vld [vmem:[#allocation2] sm:$0x1]
    %v57 = vld [vmem:[%s0] sm:$0x1]
    %59 = vset.pattern.permute.xlu0 0
    %60 = vperm.xlu0 %59, %v29
    %v61 = vpop.permute.xlu0 %60
    %64 = vset.pattern.permute.xlu0 0
    %65 = vperm.xlu0 %64, %v30
    %v66 = vpop.permute.xlu0 %65
    %69 = vset.pattern.permute.xlu0 0
    %70 = vperm.xlu0 %69, %v31
    %v71 = vpop.permute.xlu0 %70
    %74 = vset.pattern.permute.xlu0 0
    %75 = vperm.xlu0 %74, %v32
    %v76 = vpop.permute.xlu0 %75
    %v78 = vlaneseq
    %v79 = vshrl.u32 %v78, 7
    %v80 = vsub.s32 0, %v79
    %v81 = vrot.slane %v57, %v80
    %v82 = vmul.f32 %v61, %v81
    %v83 = vmul.f32 %v66, %v81
    %v84 = vmul.f32 %v71, %v81
    %v85 = vmul.f32 %v76, %v81
    %87 = vset.pattern.permute.xlu0 0
    %88 = vperm.xlu0 %87, %v33
    %v89 = vpop.permute.xlu0 %88
    %92 = vset.pattern.permute.xlu0 0
    %93 = vperm.xlu0 %92, %v34
    %v94 = vpop.permute.xlu0 %93
    %97 = vset.pattern.permute.xlu0 0
    %98 = vperm.xlu0 %97, %v35
    %v99 = vpop.permute.xlu0 %98
    %102 = vset.pattern.permute.xlu0 0
    %103 = vperm.xlu0 %102, %v36
    %v104 = vpop.permute.xlu0 %103
    %v106 = vadd.f32 %v89, %v82
    %v107 = vadd.f32 %v94, %v83
    %v108 = vadd.f32 %v99, %v84
    %v109 = vadd.f32 %v104, %v85
    %v110 = vld [vmem:[%s0 + $0x1] sm:$0x1]
    %111 = vset.pattern.permute.xlu0 1
    %112 = vperm.xlu0 %111, %v29
    %v113 = vpop.permute.xlu0 %112
    %115 = vset.pattern.permute.xlu0 1
    %116 = vperm.xlu0 %115, %v30
    %v117 = vpop.permute.xlu0 %116
    %119 = vset.pattern.permute.xlu0 1
    %120 = vperm.xlu0 %119, %v31
    %v121 = vpop.permute.xlu0 %120
    %123 = vset.pattern.permute.xlu0 1
    %124 = vperm.xlu0 %123, %v32
    %v125 = vpop.permute.xlu0 %124
    %v127 = vlaneseq
    %v128 = vshrl.u32 %v127, 7
    %v129 = vsub.s32 0, %v128
    %v130 = vrot.slane %v110, %v129
    %v131 = vmul.f32 %v113, %v130
    %v132 = vmul.f32 %v117, %v130
    %v133 = vmul.f32 %v121, %v130
    %v134 = vmul.f32 %v125, %v130
    %v135 = vadd.f32 %v106, %v131
    %v136 = vadd.f32 %v107, %v132
    %v137 = vadd.f32 %v108, %v133
    %v138 = vadd.f32 %v109, %v134
    %v139 = vtanh.pop %v135
    %v140 = vtanh.pop %v136
    %v141 = vtanh.pop %v137
    %v142 = vtanh.pop %v138
    %144 = vset.pattern.permute.xlu0 0
    %145 = vperm.xlu0 %144, %v46
    %v146 = vpop.permute.xlu0 %145
    %149 = vset.pattern.permute.xlu0 0
    %150 = vperm.xlu0 %149, %v47
    %v151 = vpop.permute.xlu0 %150
    %154 = vset.pattern.permute.xlu0 0
    %155 = vperm.xlu0 %154, %v48
    %v156 = vpop.permute.xlu0 %155
    %159 = vset.pattern.permute.xlu0 0
    %160 = vperm.xlu0 %159, %v49
    %v161 = vpop.permute.xlu0 %160
    %vm163 = vcmask 261120
    %v165 = vsel %vm163, %v37, 0
    %v168 = vsel %vm163, %v38, 0
    %v171 = vsel %vm163, %v39, 0
    %v174 = vsel %vm163, %v40, 0
    %176 = vmatprep.subr.mxu0 0.0
    %177 = vmatpush1.msra.mxu0 0.0
    %178 = vmatprep.subr.mxu0 0.0
    %179 = vmatpush1.msra.mxu0 0.0
    %180 = vmatprep.subr.mxu0 0.0
    %181 = vmatpush1.msra.mxu0 0.0
    %182 = vmatprep.subr.mxu0 0.0
    %183 = vmatpush1.msra.mxu0 0.0
    %184 = vmatprep.subr.mxu0 0.0
    %185 = vmatpush1.msra.mxu0 0.0
    %186 = vmatprep.subr.mxu0 0.0
    %187 = vmatpush1.msra.mxu0 0.0
    %188 = vmatprep.subr.mxu0 0.0
    %189 = vmatpush1.msra.mxu0 0.0
    %190 = vmatprep.subr.mxu0 0.0
    %191 = vmatpush1.msra.mxu0 0.0
    %192 = vmatprep.subr.mxu0 0.0
    %193 = vmatpush1.msra.mxu0 0.0
    %194 = vmatprep.subr.mxu0 0.0
    %195 = vmatpush1.msra.mxu0 0.0
    %196 = vmatprep.subr.mxu0 0.0
    %197 = vmatpush1.msra.mxu0 0.0
    %198 = vmatprep.subr.mxu0 0.0
    %199 = vmatpush1.msra.mxu0 0.0
    %200 = vmatprep.subr.mxu0 0.0
    %201 = vmatpush1.msra.mxu0 %v142
    %202 = vmatprep.subr.mxu0 0.0
    %203 = vmatpush1.msra.mxu0 %v141
    %204 = vmatprep.subr.mxu0 0.0
    %205 = vmatpush1.msra.mxu0 %v140
    %206 = vmatprep.subr.mxu0 0.0
    %207 = vmatpush1.msra.mxu0 %v139
    %208 = vmatprep.subr.mxu0 0.0
    %209 = vmatpush2.msra.mxu0 0.0
    %210 = vmatprep.subr.mxu0 0.0
    %211 = vmatpush2.msra.mxu0 0.0
    %212 = vmatprep.subr.mxu0 0.0
    %213 = vmatpush2.msra.mxu0 0.0
    %214 = vmatprep.subr.mxu0 0.0
    %215 = vmatpush2.msra.mxu0 0.0
    %216 = vmatprep.subr.mxu0 0.0
    %217 = vmatpush2.msra.mxu0 0.0
    %218 = vmatprep.subr.mxu0 0.0
    %219 = vmatpush2.msra.mxu0 0.0
    %220 = vmatprep.subr.mxu0 0.0
    %221 = vmatpush2.msra.mxu0 0.0
    %222 = vmatprep.subr.mxu0 0.0
    %223 = vmatpush2.msra.mxu0 0.0
    %224 = vmatprep.subr.mxu0 0.0
    %225 = vmatpush2.msra.mxu0 0.0
    %226 = vmatprep.subr.mxu0 0.0
    %227 = vmatpush2.msra.mxu0 0.0
    %228 = vmatprep.subr.mxu0 0.0
    %229 = vmatpush2.msra.mxu0 0.0
    %230 = vmatprep.subr.mxu0 0.0
    %231 = vmatpush2.msra.mxu0 0.0
    %232 = vmatprep.subr.mxu0 0.0
    %233 = vmatpush2.msra.mxu0 0.0
    %234 = vmatprep.subr.mxu0 0.0
    %235 = vmatpush2.msra.mxu0 0.0
    %236 = vmatprep.subr.mxu0 0.0
    %237 = vmatpush2.msra.mxu0 0.0
    %238 = vmatprep.subr.mxu0 0.0
    %239 = vmatpush2.msra.mxu0 0.0
    %240 = vmatprep.mubr.f32.mxu0 0.0
    %241 = vmatmul.mubr.f32.gmra.mxu0 %v165
    %v242 = vpop.f32.mrf.mxu0
    %v243 = vadd.f32 %v146, %v242
    %v244 = vpop.f32.mrf.mxu0
    %245 = vmatprep.mubr.f32.mxu0 0.0
    %246 = vmatmul.mubr.f32.gmra.mxu0 %v168
    %v247 = vpop.f32.mrf.mxu0
    %v248 = vadd.f32 %v151, %v247
    %v249 = vpop.f32.mrf.mxu0
    %250 = vmatprep.mubr.f32.mxu0 0.0
    %251 = vmatmul.mubr.f32.gmra.mxu0 %v171
    %v252 = vpop.f32.mrf.mxu0
    %v253 = vadd.f32 %v156, %v252
    %v254 = vpop.f32.mrf.mxu0
    %255 = vmatprep.mubr.f32.mxu0 0.0
    %256 = vmatmul.mubr.f32.gmra.mxu0 %v174
    %v257 = vpop.f32.mrf.mxu0
    %v258 = vadd.f32 %v161, %v257
    %v259 = vpop.f32.mrf.mxu0
    %260 = vdwg.mxu0
    %v261 = vtanh.pop %v243
    %v262 = vtanh.pop %v248
    %v263 = vtanh.pop %v253
    %v264 = vtanh.pop %v258
    %266 = vset.pattern.permute.xlu0 0
    %267 = vperm.xlu0 %266, %v51
    %v268 = vpop.permute.xlu0 %267
    %271 = vset.pattern.permute.xlu0 0
    %272 = vperm.xlu0 %271, %v52
    %v273 = vpop.permute.xlu0 %272
    %276 = vset.pattern.permute.xlu0 0
    %277 = vperm.xlu0 %276, %v53
    %v278 = vpop.permute.xlu0 %277
    %281 = vset.pattern.permute.xlu0 0
    %282 = vperm.xlu0 %281, %v54
    %v283 = vpop.permute.xlu0 %282
    %v286 = vsel %vm163, %v42, 0
    %v289 = vsel %vm163, %v43, 0
    %v292 = vsel %vm163, %v44, 0
    %v295 = vsel %vm163, %v45, 0
    %297 = vmatprep.subr.mxu0 0.0
    %298 = vmatpush1.msra.mxu0 0.0
    %299 = vmatprep.subr.mxu0 0.0
    %300 = vmatpush1.msra.mxu0 0.0
    %301 = vmatprep.subr.mxu0 0.0
    %302 = vmatpush1.msra.mxu0 0.0
    %303 = vmatprep.subr.mxu0 0.0
    %304 = vmatpush1.msra.mxu0 0.0
    %305 = vmatprep.subr.mxu0 0.0
    %306 = vmatpush1.msra.mxu0 0.0
    %307 = vmatprep.subr.mxu0 0.0
    %308 = vmatpush1.msra.mxu0 0.0
    %309 = vmatprep.subr.mxu0 0.0
    %310 = vmatpush1.msra.mxu0 0.0
    %311 = vmatprep.subr.mxu0 0.0
    %312 = vmatpush1.msra.mxu0 0.0
    %313 = vmatprep.subr.mxu0 0.0
    %314 = vmatpush1.msra.mxu0 0.0
    %315 = vmatprep.subr.mxu0 0.0
    %316 = vmatpush1.msra.mxu0 0.0
    %317 = vmatprep.subr.mxu0 0.0
    %318 = vmatpush1.msra.mxu0 0.0
    %319 = vmatprep.subr.mxu0 0.0
    %320 = vmatpush1.msra.mxu0 0.0
    %321 = vmatprep.subr.mxu0 0.0
    %322 = vmatpush1.msra.mxu0 %v264
    %323 = vmatprep.subr.mxu0 0.0
    %324 = vmatpush1.msra.mxu0 %v263
    %325 = vmatprep.subr.mxu0 0.0
    %326 = vmatpush1.msra.mxu0 %v262
    %327 = vmatprep.subr.mxu0 0.0
    %328 = vmatpush1.msra.mxu0 %v261
    %329 = vmatprep.subr.mxu0 0.0
    %330 = vmatpush2.msra.mxu0 0.0
    %331 = vmatprep.subr.mxu0 0.0
    %332 = vmatpush2.msra.mxu0 0.0
    %333 = vmatprep.subr.mxu0 0.0
    %334 = vmatpush2.msra.mxu0 0.0
    %335 = vmatprep.subr.mxu0 0.0
    %336 = vmatpush2.msra.mxu0 0.0
    %337 = vmatprep.subr.mxu0 0.0
    %338 = vmatpush2.msra.mxu0 0.0
    %339 = vmatprep.subr.mxu0 0.0
    %340 = vmatpush2.msra.mxu0 0.0
    %341 = vmatprep.subr.mxu0 0.0
    %342 = vmatpush2.msra.mxu0 0.0
    %343 = vmatprep.subr.mxu0 0.0
    %344 = vmatpush2.msra.mxu0 0.0
    %345 = vmatprep.subr.mxu0 0.0
    %346 = vmatpush2.msra.mxu0 0.0
    %347 = vmatprep.subr.mxu0 0.0
    %348 = vmatpush2.msra.mxu0 0.0
    %349 = vmatprep.subr.mxu0 0.0
    %350 = vmatpush2.msra.mxu0 0.0
    %351 = vmatprep.subr.mxu0 0.0
    %352 = vmatpush2.msra.mxu0 0.0
    %353 = vmatprep.subr.mxu0 0.0
    %354 = vmatpush2.msra.mxu0 0.0
    %355 = vmatprep.subr.mxu0 0.0
    %356 = vmatpush2.msra.mxu0 0.0
    %357 = vmatprep.subr.mxu0 0.0
    %358 = vmatpush2.msra.mxu0 0.0
    %359 = vmatprep.subr.mxu0 0.0
    %360 = vmatpush2.msra.mxu0 0.0
    %361 = vmatprep.mubr.f32.mxu0 0.0
    %362 = vmatmul.mubr.f32.gmra.mxu0 %v286
    %v363 = vpop.f32.mrf.mxu0
    %v364 = vadd.f32 %v268, %v363
    %v365 = vpop.f32.mrf.mxu0
    %366 = vmatprep.mubr.f32.mxu0 0.0
    %367 = vmatmul.mubr.f32.gmra.mxu0 %v289
    %v368 = vpop.f32.mrf.mxu0
    %v369 = vadd.f32 %v273, %v368
    %v370 = vpop.f32.mrf.mxu0
    %371 = vmatprep.mubr.f32.mxu0 0.0
    %372 = vmatmul.mubr.f32.gmra.mxu0 %v292
    %v373 = vpop.f32.mrf.mxu0
    %v374 = vadd.f32 %v278, %v373
    %v375 = vpop.f32.mrf.mxu0
    %376 = vmatprep.mubr.f32.mxu0 0.0
    %377 = vmatmul.mubr.f32.gmra.mxu0 %v295
    %v378 = vpop.f32.mrf.mxu0
    %v379 = vadd.f32 %v283, %v378
    %v380 = vpop.f32.mrf.mxu0
    %381 = vdwg.mxu0
    %v382 = vtanh.pop %v364
    %v383 = vtanh.pop %v369
    %v384 = vtanh.pop %v374
    %v385 = vtanh.pop %v379
    %387 = vset.pattern.permute.xlu0 0
    %388 = vperm.xlu0 %387, %v56
    %v389 = vpop.permute.xlu0 %388
    %v391 = vlaneseq
    %v392 = vshrl.u32 %v391, 7
    %v393 = vsub.s32 0, %v392
    %v394 = vrot.slane %v389, %v393
    %v396 = vsel %vm163, %v55, 0
    %398 = vmatprep.subr.mxu0 0.0
    %399 = vmatpush1.msra.mxu0 0.0
    %400 = vmatprep.subr.mxu0 0.0
    %401 = vmatpush1.msra.mxu0 0.0
    %402 = vmatprep.subr.mxu0 0.0
    %403 = vmatpush1.msra.mxu0 0.0
    %404 = vmatprep.subr.mxu0 0.0
    %405 = vmatpush1.msra.mxu0 0.0
    %406 = vmatprep.subr.mxu0 0.0
    %407 = vmatpush1.msra.mxu0 0.0
    %408 = vmatprep.subr.mxu0 0.0
    %409 = vmatpush1.msra.mxu0 0.0
    %410 = vmatprep.subr.mxu0 0.0
    %411 = vmatpush1.msra.mxu0 0.0
    %412 = vmatprep.subr.mxu0 0.0
    %413 = vmatpush1.msra.mxu0 0.0
    %414 = vmatprep.subr.mxu0 0.0
    %415 = vmatpush1.msra.mxu0 0.0
    %416 = vmatprep.subr.mxu0 0.0
    %417 = vmatpush1.msra.mxu0 0.0
    %418 = vmatprep.subr.mxu0 0.0
    %419 = vmatpush1.msra.mxu0 0.0
    %420 = vmatprep.subr.mxu0 0.0
    %421 = vmatpush1.msra.mxu0 0.0
    %422 = vmatprep.subr.mxu0 0.0
    %423 = vmatpush1.msra.mxu0 %v385
    %424 = vmatprep.subr.mxu0 0.0
    %425 = vmatpush1.msra.mxu0 %v384
    %426 = vmatprep.subr.mxu0 0.0
    %427 = vmatpush1.msra.mxu0 %v383
    %428 = vmatprep.subr.mxu0 0.0
    %429 = vmatpush1.msra.mxu0 %v382
    %430 = vmatprep.subr.mxu0 0.0
    %431 = vmatpush2.msra.mxu0 0.0
    %432 = vmatprep.subr.mxu0 0.0
    %433 = vmatpush2.msra.mxu0 0.0
    %434 = vmatprep.subr.mxu0 0.0
    %435 = vmatpush2.msra.mxu0 0.0
    %436 = vmatprep.subr.mxu0 0.0
    %437 = vmatpush2.msra.mxu0 0.0
    %438 = vmatprep.subr.mxu0 0.0
    %439 = vmatpush2.msra.mxu0 0.0
    %440 = vmatprep.subr.mxu0 0.0
    %441 = vmatpush2.msra.mxu0 0.0
    %442 = vmatprep.subr.mxu0 0.0
    %443 = vmatpush2.msra.mxu0 0.0
    %444 = vmatprep.subr.mxu0 0.0
    %445 = vmatpush2.msra.mxu0 0.0
    %446 = vmatprep.subr.mxu0 0.0
    %447 = vmatpush2.msra.mxu0 0.0
    %448 = vmatprep.subr.mxu0 0.0
    %449 = vmatpush2.msra.mxu0 0.0
    %450 = vmatprep.subr.mxu0 0.0
    %451 = vmatpush2.msra.mxu0 0.0
    %452 = vmatprep.subr.mxu0 0.0
    %453 = vmatpush2.msra.mxu0 0.0
    %454 = vmatprep.subr.mxu0 0.0
    %455 = vmatpush2.msra.mxu0 0.0
    %456 = vmatprep.subr.mxu0 0.0
    %457 = vmatpush2.msra.mxu0 0.0
    %458 = vmatprep.subr.mxu0 0.0
    %459 = vmatpush2.msra.mxu0 0.0
    %460 = vmatprep.subr.mxu0 0.0
    %461 = vmatpush2.msra.mxu0 0.0
    %462 = vmatprep.mubr.f32.mxu0 0.0
    %463 = vmatmul.mubr.f32.gmra.mxu0 %v396
    %v464 = vpop.f32.mrf.mxu0
    %v465 = vadd.f32 %v394, %v464
    %v466 = vpop.f32.mrf.mxu0
    %467 = vdwg.mxu0
    %468 = vst [vmem:[#allocation3] sm:$0x1] %v465
    // Predicated region
    $region30: #{tpu_custom_call.1} parent=1 // pred_check
      _
    $region31: #{tpu_custom_call.1} parent=1 // pred_check_branch
      %470 = sbr.rel (0) target = $region33
    $region32: #{tpu_custom_call.1} parent=1 // pred_region
      %s472 = ssub.s32 16, 16
      %473 = vsyncadd [#allocation4], %s472
      %s475 = sshll.u32 [#allocation3], 4
      %s476 = int_to_ptr.vmem [resolvable:$true] %s475
      %478 = dma.vmem_to_hbm [thread:$0]  %s476, 16, %s7, [#allocation4]
    $region33: #{tpu_custom_call.1} parent=1 // pred_fallthru
      _
    // Predicated region
    $region34: #{tpu_custom_call.1} parent=1 // pred_check
      _
    $region35: #{tpu_custom_call.1} parent=1 // pred_check_branch
      %480 = sbr.rel (0) target = $region37
    $region36: #{tpu_custom_call.1} parent=1 // pred_region
      %481 = dma.done [#allocation4], 16
    $region37: #{tpu_custom_call.1} parent=1 // pred_fallthru
      _
    %482 = vsyncpa [#allocation4], 1

</llo_original>
